<compile_context>
chip_gen: v5e
topology: v5e:2x2
jax: 0.10.0
libtpu: 0.0.40
codegen_flags: <defaults>
</compile_context>

<pallas_src>
import jax
import jax.numpy as jnp
from jax.experimental import pallas as pl
from jax.experimental.pallas import tpu as pltpu


def _round_up(x, m):
    return (x + m - 1) // m * m


def _patch_encoder_kernel(x_ref, w_ref, posb_ref, o_ref):
    # x_ref:    (1, TN, Din_pad)   bf16  -- one batch element, TN patch rows
    # w_ref:    (Din_pad, Dp_pad)  bf16  -- grid-invariant projection weight
    # posb_ref: (TN, Dp_pad)       f32   -- pos_embedding rows + linear bias (pre-folded)
    # o_ref:    (1, TN, Dp_pad)    f32
    proj = jnp.dot(x_ref[0], w_ref[...], preferred_element_type=jnp.float32)  # MXU, f32 acc
    o_ref[0] = (proj + posb_ref[...]).astype(o_ref.dtype)


def patch_encoder(x, w, b, pos_emb, *, patch_tile=256):
    """PatchEncoder forward.

    x:       (B, N, Din) float32
    w:       (Din, Dproj)   -- torch Linear weight, stored transposed
    b:       (Dproj,)
    pos_emb: (N, Dproj)     -- embedding table rows 0..N-1 (gather of arange(N) is identity)
    returns  (B, N, Dproj) float32 = x @ w + b + pos_emb[None]
    """
    B, N, Din = x.shape
    Dproj = w.shape[1]
    out_dtype = x.dtype

    # ---- TPU-friendly padded shapes -------------------------------------------------
    TN = min(_round_up(N, 8), patch_tile)      # patch rows per grid step (multiple of 8)
    N_pad = _round_up(N, TN)
    Din_pad = _round_up(Din, 128)              # lane-dense contraction dim
    Dp_pad = _round_up(Dproj, 128)             # lane-dense output dim -> unmasked vst

    # Fold the linear bias into the positional embedding (drops one input stream).
    pos_bias = (pos_emb + b[None, :]).astype(jnp.float32)

    # Zero-pad (zeros in padded K columns/rows keep the matmul result exact) and
    # cast the matmul operands to bf16 (halves HBM bytes, MXU-native dtype).
    x_p = jnp.pad(x, ((0, 0), (0, N_pad - N), (0, Din_pad - Din))).astype(jnp.bfloat16)
    w_p = jnp.pad(w, ((0, Din_pad - Din), (0, Dp_pad - Dproj))).astype(jnp.bfloat16)
    posb_p = jnp.pad(pos_bias, ((0, N_pad - N), (0, Dp_pad - Dproj)))

    grid = (B, N_pad // TN)

    cost = pl.CostEstimate(
        flops=2 * B * N_pad * Din_pad * Dp_pad,
        transcendentals=0,
        bytes_accessed=(x_p.size * 2 + w_p.size * 2 + posb_p.size * 4
                        + B * N_pad * Dp_pad * 4),
    )

    out = pl.pallas_call(
        _patch_encoder_kernel,
        out_shape=jax.ShapeDtypeStruct((B, N_pad, Dp_pad), out_dtype),
        grid_spec=pltpu.PrefetchScalarGridSpec(
            num_scalar_prefetch=0,
            grid=grid,
            in_specs=[
                # x: one batch element, TN patch rows per step
                pl.BlockSpec((1, TN, Din_pad), lambda bi, ni: (bi, ni, 0)),
                # W: grid-invariant (constant index_map -> no re-DMA across steps)
                pl.BlockSpec((Din_pad, Dp_pad), lambda bi, ni: (0, 0)),
                # pos+bias: broadcast over batch, indexed by the patch-tile axis
                pl.BlockSpec((TN, Dp_pad), lambda bi, ni: (ni, 0)),
            ],
            out_specs=pl.BlockSpec((1, TN, Dp_pad), lambda bi, ni: (bi, ni, 0)),
        ),
        compiler_params=pltpu.CompilerParams(
            # both axes independent -> megacore / 2-TC sharding on v7x
            dimension_semantics=("parallel", "parallel"),
        ),
        cost_estimate=cost,
    )(x_p, w_p, posb_p)

    # Slice the padded output back to the module's shape.
    return out[:, :N, :Dproj]


if __name__ == "__main__":
    # Small, module-consistent shapes: batch=2, num_patches=8, input_size=32,
    # project_dim=64 (module default).
    B, N, Din, Dproj = 2, 8, 32, 64

    key = jax.random.PRNGKey(0)
    kx, kw, kb, kp = jax.random.split(key, 4)

    x = jax.random.normal(kx, (B, N, Din), dtype=jnp.float32)
    # nn.Linear weight (Dproj, Din) stored transposed as (Din, Dproj).
    w = jax.random.normal(kw, (Din, Dproj), dtype=jnp.float32) * 0.02
    b = jax.random.normal(kb, (Dproj,), dtype=jnp.float32) * 0.02
    # nn.Embedding table indexed by arange(N) -> exactly its first N rows.
    pos_emb = jax.random.normal(kp, (N, Dproj), dtype=jnp.float32) * 0.02

    out = jax.block_until_ready(patch_encoder(x, w, b, pos_emb))

    # Reference in plain JAX (f32). Kernel uses bf16 operands -> loose tolerance.
    ref = jnp.einsum("bni,ij->bnj", x, w) + b[None, None, :] + pos_emb[None, :, :]
    assert out.shape == (B, N, Dproj)
    assert jnp.allclose(out, ref, atol=3e-2, rtol=3e-2), float(jnp.max(jnp.abs(out - ref)))

    print("KERNEL_OK")
</pallas_src>

<mosaic_0001>
module attributes {stable_mosaic.version = 11 : i64} {
  func.func @_patch_encoder_kernel(%arg0: i32, %arg1: i32, %arg2: memref<1x8x128xbf16, #tpu.memory_space<vmem>>, %arg3: memref<128x128xbf16, #tpu.memory_space<vmem>>, %arg4: memref<8x128xf32, #tpu.memory_space<vmem>>, %arg5: memref<1x8x128xf32, #tpu.memory_space<vmem>>) attributes {dimension_semantics = [#tpu.dimension_semantics<parallel>, #tpu.dimension_semantics<parallel>], iteration_bounds = array<i64: 2, 1>, scalar_prefetch = 0 : i64, scratch_operands = 0 : i64, tpu.core_type = #tpu.core_type<tc>, window_params = [{transform_indices = @transform_0, window_bounds = array<i64: 1, 8, 128>}, {pipeline_mode = #tpu.pipeline_mode<synchronous>, transform_indices = @transform_1, window_bounds = array<i64: 128, 128>}, {transform_indices = @transform_2, window_bounds = array<i64: 8, 128>}, {transform_indices = @transform_3, window_bounds = array<i64: 1, 8, 128>}]} {
    %c0 = arith.constant 0 : index
    %c0_0 = arith.constant 0 : index
    %c0_1 = arith.constant 0 : index
    %0 = vector.load %arg2[%c0, %c0_0, %c0_1] : memref<1x8x128xbf16, #tpu.memory_space<vmem>>, vector<1x8x128xbf16>
    %1 = vector.shape_cast %0 : vector<1x8x128xbf16> to vector<8x128xbf16>
    %c0_2 = arith.constant 0 : index
    %c0_3 = arith.constant 0 : index
    %2 = vector.load %arg3[%c0_2, %c0_3] : memref<128x128xbf16, #tpu.memory_space<vmem>>, vector<128x128xbf16>
    %cst = arith.constant dense<0.000000e+00> : vector<8x128xf32>
    %3 = tpu.matmul %1, %2, %cst {dimension_numbers = #tpu.dot_dimension_numbers<[1], [0], [0], [1], [0, 0, 1, 1], [], []>} : vector<8x128xbf16>, vector<128x128xbf16>, vector<8x128xf32> -> vector<8x128xf32>
    %c0_4 = arith.constant 0 : index
    %c0_5 = arith.constant 0 : index
    %4 = vector.load %arg4[%c0_4, %c0_5] : memref<8x128xf32, #tpu.memory_space<vmem>>, vector<8x128xf32>
    %5 = arith.addf %3, %4 : vector<8x128xf32>
    %c0_6 = arith.constant 0 : index
    %c0_7 = arith.constant 0 : index
    %c0_8 = arith.constant 0 : index
    %6 = vector.load %arg5[%c0_6, %c0_7, %c0_8] : memref<1x8x128xf32, #tpu.memory_space<vmem>>, vector<1x8x128xf32>
    %7 = vector.shape_cast %6 : vector<1x8x128xf32> to vector<8x128xf32>
    %8 = vector.shape_cast %5 : vector<8x128xf32> to vector<1x8x128xf32>
    tpu.vector_store %arg5[%c0_6, %c0_7, %c0_8], %8 {strides = array<i32>} : memref<1x8x128xf32, #tpu.memory_space<vmem>>, vector<1x8x128xf32>,
    return
  }
  func.func @transform_0(%arg0: i32, %arg1: i32) -> (i32, i32, i32) {
    %c0_i32 = arith.constant 0 : i32
    %c0_i32_0 = arith.constant 0 : i32
    return %arg0, %arg1, %c0_i32 : i32, i32, i32
  }
  func.func @transform_1(%arg0: i32, %arg1: i32) -> (i32, i32) {
    %c0_i32 = arith.constant 0 : i32
    %c0_i32_0 = arith.constant 0 : i32
    %c0_i32_1 = arith.constant 0 : i32
    return %c0_i32, %c0_i32_0 : i32, i32
  }
  func.func @transform_2(%arg0: i32, %arg1: i32) -> (i32, i32) {
    %c0_i32 = arith.constant 0 : i32
    %c0_i32_0 = arith.constant 0 : i32
    return %arg1, %c0_i32 : i32, i32
  }
  func.func @transform_3(%arg0: i32, %arg1: i32) -> (i32, i32, i32) {
    %c0_i32 = arith.constant 0 : i32
    %c0_i32_0 = arith.constant 0 : i32
    return %arg0, %arg1, %c0_i32 : i32, i32, i32
  }
}

</mosaic_0001>

<llo_original>
// kernel: tpu_custom_call.1
$region0: #{tpu_custom_call.1}
  #allocation0 [shape = 'u32[]', space=smem, size = 0x4, offset = 0x4, fixed_abs, tag = 'smem constant byte address 0x4 - core index']
  #allocation1 [shape = 'u32[72,128]{1,0:T(1,128)}', space=vmem, size = 0x9000, scoped, tag = 'internal scratch']
  %s0 = inlined_call_operand.hbm [shape: bf16[2,8,128], index: 0, kind: input, shape index: {}]
  %s1 = inlined_call_operand.hbm [shape: bf16[128,128], index: 1, kind: input, shape index: {}]
  %s2 = inlined_call_operand.hbm [shape: f32[8,128], index: 2, kind: input, shape index: {}]
  %s3 = inlined_call_operand.hbm [shape: f32[2,8,128], index: 3, kind: output, shape index: {}]
  %s4 = sld [smem:[#allocation0]]
  $region57: #{tpu_custom_call.1} parent=0
    _
  %s6 = ssub.s32 1, %s4
  %s7 = scalar_select 0, %s6, %s4
  $region1: #{tpu_custom_call.1} parent=0
    #allocation2 [shape = 'u8[4096]{0}', space=vmem, size = 0x1000, scoped, tag = 'input window, operand 0']
    #allocation3 [shape = 's32[2]{0}', space=sflag, size = 0x8, scoped, tag = 'scoped memory for tpu_custom_call.1']
    #allocation4 [shape = 's32[2]{0}', space=sflag, size = 0x8, scoped, tag = 'scoped memory for tpu_custom_call.1']
    #allocation5 [shape = 'u8[32768]{0}', space=vmem, size = 0x8000, scoped, tag = 'input window, operand 1, single buffered']
    #allocation6 [shape = 's32[1]{0}', space=sflag, size = 0x4, scoped, tag = 'scoped memory for tpu_custom_call.1']
    #allocation7 [shape = 'u8[4096]{0}', space=vmem, size = 0x1000, scoped, tag = 'input window, operand 2, single buffered']
    #allocation8 [shape = 'u8[8192]{0}', space=vmem, size = 0x2000, scoped, tag = 'output window, operand 0']
    %8 = vsyncpa [#allocation3], 0
    %s9 = scalar_lea.sflag [#allocation3], 1
    %10 = vsyncpa %s9, 0
    %11 = vsyncpa [#allocation6], 0
    %12 = vsyncpa [#allocation4], 0
    %s13 = scalar_lea.sflag [#allocation4], 1
    %14 = vsyncpa %s13, 0
    loop: start=0, step=1, limit=4
    $region2: #{tpu_custom_call.1} parent=1 // loop_pre_header
      _
    $region3: #{tpu_custom_call.1} parent=1 // loop_header
      %s16 = sphi 0, %s20
      %p17 = scmp.ge.s32.totalorder %s16, 4
      %s23 = sphi 0, %s35
      %s24 = sphi 0, %s31
      %s25 = sphi 0, %s23
      %s26 = sphi 0, %s24
      %s27 = sphi 0, %s25
      %s28 = sphi 0, %s26
      %s40 = sphi 0, %s42
      %s43 = sphi 0, %s40
      %s44 = sphi 0, %s43
      %s60 = sphi 0, %s44
      %s64 = sphi 0, %s64
      %s66 = sphi 0, %s64
      %s67 = sphi 0, %s66
      %s81 = sphi 0, %s67
      %s87 = sphi 0, %s89
      %s90 = sphi 0, %s87
      %s91 = sphi 0, %s90
      %s107 = sphi 0, %s91
      %s115 = sphi 0, %s117
      %s118 = sphi 0, %s115
      %s119 = sphi 0, %s118
      %s135 = sphi 0, %s119
    $region4: #{tpu_custom_call.1} parent=1 // loop_header_branch
      %19 = sbr.rel (%p17) target = $region8
    $region5: #{tpu_custom_call.1} parent=1 // loop_body
      %s21 = ssub.s32 %s16, 1
      %s22 = ssub.s32 %s16, 2
      %s29 = sadd.s32 1, %s24
      %p30 = scmp.ge.s32.totalorder %s29, 1
      %s31 = scalar_select %p30, 0, %s29
      %s32 = sadd.s32 1, %s23
      %s33 = scalar_select %p30, %s32, %s23
      %p34 = scmp.ge.s32.totalorder %s33, 2
      %s35 = scalar_select %p34, 0, %s33
      %s36 = ssub.s32 %s23, %s35
      %s37 = ssub.s32 %s24, %s31
      %s38 = sor.u32 %s36, %s37
      %p39 = scmp.eq.s32.totalorder %s38, 0
      %s41 = sadd.s32 %s40, 1
      %s42 = scalar_select %p39, %s40, %s41
      %p45 = pneg %p39
      %p46 = scmp.eq.s32.totalorder %s16, 1
      %p47 = por %p45, %p46
      %p48 = scmp.ne.s32.totalorder %s40, %s43
      %p49 = scmp.eq.s32.totalorder %s16, 0
      %p50 = por %p48, %p49
      %p51 = scmp.ne.s32.totalorder %s40, %s43
      %p52 = scmp.eq.s32.totalorder %s21, 1
      %p53 = por %p51, %p52
      %p54 = scmp.ne.s32.totalorder %s43, %s44
      %p55 = scmp.eq.s32.totalorder %s21, 0
      %p56 = por %p54, %p55
      %p57 = scmp.ne.s32.totalorder %s43, %s44
      %p58 = scmp.eq.s32.totalorder %s22, 1
      %p59 = por %p57, %p58
      %p61 = scmp.ne.s32.totalorder %s44, %s60
      %p62 = scmp.eq.s32.totalorder %s22, 0
      %p63 = por %p61, %p62
      %s65 = sadd.s32 %s64, 1
      %p68 = scmp.eq.s32.totalorder %s16, 1
      %p69 = scmp.ne.s32.totalorder %s64, %s66
      %p70 = scmp.eq.s32.totalorder %s16, 0
      %p71 = por %p69, %p70
      %p72 = scmp.ne.s32.totalorder %s64, %s66
      %p73 = scmp.eq.s32.totalorder %s21, 1
      %p74 = por %p72, %p73
      %p75 = scmp.ne.s32.totalorder %s66, %s67
      %p76 = scmp.eq.s32.totalorder %s21, 0
      %p77 = por %p75, %p76
      %p78 = scmp.ne.s32.totalorder %s66, %s67
      %p79 = scmp.eq.s32.totalorder %s22, 1
      %p80 = por %p78, %p79
      %p82 = scmp.ne.s32.totalorder %s67, %s81
      %p83 = scmp.eq.s32.totalorder %s22, 0
      %p84 = por %p82, %p83
      %s85 = ssub.s32 %s24, %s31
      %p86 = scmp.eq.s32.totalorder %s85, 0
      %s88 = sadd.s32 %s87, 1
      %s89 = scalar_select %p86, %s87, %s88
      %p92 = pneg %p86
      %p93 = scmp.eq.s32.totalorder %s16, 1
      %p94 = por %p92, %p93
      %p95 = scmp.ne.s32.totalorder %s87, %s90
      %p96 = scmp.eq.s32.totalorder %s16, 0
      %p97 = por %p95, %p96
      %p98 = scmp.ne.s32.totalorder %s87, %s90
      %p99 = scmp.eq.s32.totalorder %s21, 1
      %p100 = por %p98, %p99
      %p101 = scmp.ne.s32.totalorder %s90, %s91
      %p102 = scmp.eq.s32.totalorder %s21, 0
      %p103 = por %p101, %p102
      %p104 = scmp.ne.s32.totalorder %s90, %s91
      %p105 = scmp.eq.s32.totalorder %s22, 1
      %p106 = por %p104, %p105
      %p108 = scmp.ne.s32.totalorder %s91, %s107
      %p109 = scmp.eq.s32.totalorder %s22, 0
      %p110 = por %p108, %p109
      %s111 = ssub.s32 %s23, %s35
      %s112 = ssub.s32 %s24, %s31
      %s113 = sor.u32 %s111, %s112
      %p114 = scmp.eq.s32.totalorder %s113, 0
      %s116 = sadd.s32 %s115, 1
      %s117 = scalar_select %p114, %s115, %s116
      %p120 = pneg %p114
      %p121 = scmp.eq.s32.totalorder %s16, 1
      %p122 = por %p120, %p121
      %p123 = scmp.ne.s32.totalorder %s115, %s118
      %p124 = scmp.eq.s32.totalorder %s16, 0
      %p125 = por %p123, %p124
      %p126 = scmp.ne.s32.totalorder %s115, %s118
      %p127 = scmp.eq.s32.totalorder %s21, 1
      %p128 = por %p126, %p127
      %p129 = scmp.ne.s32.totalorder %s118, %s119
      %p130 = scmp.eq.s32.totalorder %s21, 0
      %p131 = por %p129, %p130
      %p132 = scmp.ne.s32.totalorder %s118, %s119
      %p133 = scmp.eq.s32.totalorder %s22, 1
      %p134 = por %p132, %p133
      %p136 = scmp.ne.s32.totalorder %s119, %s135
      %p137 = scmp.eq.s32.totalorder %s22, 0
      %p138 = por %p136, %p137
      %p139 = scmp.le.s32.totalorder 1, %s16
      %p140 = scmp.lt.s32.totalorder %s16, 3
      %p141 = pnand %p139, %p140
      %p142 = pneg %p141
      // Predicated region
      $region9: #{tpu_custom_call.1} parent=5 // pred_check
        _
      $region10: #{tpu_custom_call.1} parent=5 // pred_check_branch
        %144 = sbr.rel (%p141) target = $region12
      $region11: #{tpu_custom_call.1} parent=5 // pred_region
        %s145 = ssub.s32 %s16, 1
        // Predicated region
        $region13: #{tpu_custom_call.1} parent=11 // pred_check
          %p146 = pneg %p77
        $region14: #{tpu_custom_call.1} parent=11 // pred_check_branch
          %148 = sbr.rel (%p146) target = $region16
        $region15: #{tpu_custom_call.1} parent=11 // pred_region
          %150 = vsyncadd [#allocation6], 0
          %s151 = sshll.u32 %s1, 4
          %s152 = int_to_ptr.hbm [resolvable:$true] %s151
          %s153 = sshll.u32 [#allocation5], 4
          %s154 = int_to_ptr.vmem [resolvable:$true] %s153
          %159 = dma.hbm_to_vmem [thread:$0]  %s152, 1024, %s154, [#allocation6], 64, 64, 4
        $region16: #{tpu_custom_call.1} parent=11 // pred_fallthru
          _
        // Predicated region
        $region17: #{tpu_custom_call.1} parent=11 // pred_check
          %p160 = pneg %p103
        $region18: #{tpu_custom_call.1} parent=11 // pred_check_branch
          %162 = sbr.rel (%p160) target = $region20
        $region19: #{tpu_custom_call.1} parent=11 // pred_region
          %164 = vsyncadd [#allocation6], 0
          %s165 = smul.addr %s26, 8
          %s166 = scalar_lea.hbm %s2, %s165
          %s168 = sshll.u32 %s166, 4
          %s169 = int_to_ptr.hbm [resolvable:$true] %s168
          %s170 = sshll.u32 [#allocation7], 4
          %s171 = int_to_ptr.vmem [resolvable:$true] %s170
          %173 = dma.hbm_to_vmem [thread:$0]  %s169, 128, %s171, [#allocation6]
        $region20: #{tpu_custom_call.1} parent=11 // pred_fallthru
          _
      $region12: #{tpu_custom_call.1} parent=5 // pred_fallthru
        _
      %p174 = scmp.lt.s32.totalorder %s16, 2
      // Predicated region
      $region21: #{tpu_custom_call.1} parent=5 // pred_check
        %p175 = pneg %p174
      $region22: #{tpu_custom_call.1} parent=5 // pred_check_branch
        %177 = sbr.rel (%p175) target = $region24
      $region23: #{tpu_custom_call.1} parent=5 // pred_region
        // Predicated region
        $region25: #{tpu_custom_call.1} parent=23 // pred_check
          %p178 = pneg %p50
        $region26: #{tpu_custom_call.1} parent=23 // pred_check_branch
          %180 = sbr.rel (%p178) target = $region28
        $region27: #{tpu_custom_call.1} parent=23 // pred_region
          %s181 = sand.u32 %s40, 1
          %s182 = scalar_lea.sflag [#allocation3], %s181
          %s183 = sand.u32 %s40, 1
          %s184 = smul.addr %s183, 4
          %s185 = scalar_lea.vmem [#allocation2], %s184
          %187 = vsyncadd %s182, 0
          %s188 = sadd.s32 %s24, %s23
          %s189 = smul.addr %s188, 4
          %s190 = scalar_lea.hbm %s0, %s189
          %s192 = sshll.u32 %s190, 4
          %s193 = int_to_ptr.hbm [resolvable:$true] %s192
          %s194 = sshll.u32 %s185, 4
          %s195 = int_to_ptr.vmem [resolvable:$true] %s194
          %197 = dma.hbm_to_vmem [thread:$0]  %s193, 64, %s195, %s182
        $region28: #{tpu_custom_call.1} parent=23 // pred_fallthru
          _
      $region24: #{tpu_custom_call.1} parent=5 // pred_fallthru
        _
      %p198 = scmp.le.s32.totalorder 1, %s16
      %p199 = scmp.lt.s32.totalorder %s16, 3
      %p200 = pnand %p198, %p199
      %p201 = pneg %p200
      // Predicated region
      $region29: #{tpu_custom_call.1} parent=5 // pred_check
        _
      $region30: #{tpu_custom_call.1} parent=5 // pred_check_branch
        %203 = sbr.rel (%p200) target = $region32
      $region31: #{tpu_custom_call.1} parent=5 // pred_region
        %s204 = ssub.s32 %s16, 1
        %s205 = sand.u32 %s43, 1
        %s206 = scalar_lea.sflag [#allocation3], %s205
        %s207 = sand.u32 %s43, 1
        %s208 = smul.addr %s207, 4
        %s209 = scalar_lea.vmem [#allocation2], %s208
        // Predicated region
        $region33: #{tpu_custom_call.1} parent=31 // pred_check
          %p210 = pneg %p56
        $region34: #{tpu_custom_call.1} parent=31 // pred_check_branch
          %212 = sbr.rel (%p210) target = $region36
        $region35: #{tpu_custom_call.1} parent=31 // pred_region
          %214 = dma.done %s206, 64
        $region36: #{tpu_custom_call.1} parent=31 // pred_fallthru
          _
        // Predicated region
        $region37: #{tpu_custom_call.1} parent=31 // pred_check
          %p215 = pneg %p77
        $region38: #{tpu_custom_call.1} parent=31 // pred_check_branch
          %217 = sbr.rel (%p215) target = $region40
        $region39: #{tpu_custom_call.1} parent=31 // pred_region
          %219 = dma.done [#allocation6], 1024
        $region40: #{tpu_custom_call.1} parent=31 // pred_fallthru
          _
        // Predicated region
        $region41: #{tpu_custom_call.1} parent=31 // pred_check
          %p220 = pneg %p103
        $region42: #{tpu_custom_call.1} parent=31 // pred_check_branch
          %222 = sbr.rel (%p220) target = $region44
        $region43: #{tpu_custom_call.1} parent=31 // pred_region
          %224 = dma.done [#allocation6], 128
        $region44: #{tpu_custom_call.1} parent=31 // pred_fallthru
          _
        %s225 = sand.u32 %s43, 1
        %s226 = scalar_lea.sflag [#allocation3], %s225
        %s227 = sand.u32 %s43, 1
        %s228 = smul.addr %s227, 4
        %s229 = scalar_lea.vmem [#allocation2], %s228
        %p230 = pneg %p56
        %p231 = pneg %p53
        %p232 = pneg %p77
        %p233 = pneg %p74
        %p234 = pneg %p103
        %p235 = pneg %p100
        %p236 = pneg %p131
        %p237 = pneg %p128
        %s238 = sand.u32 %s118, 1
        %s239 = scalar_lea.sflag [#allocation4], %s238
        %s240 = sand.u32 %s118, 1
        %s241 = smul.addr %s240, 8
        %s242 = scalar_lea.vmem [#allocation8], %s241
        %v243 = vld [vmem:[%s209] sm:$0xf]
        %v244 = vld [vmem:[#allocation5] sm:$0xf]
        %v245 = vld [vmem:[#allocation5 + $0x4] sm:$0xf]
        %v246 = vld [vmem:[#allocation5 + $0x8] sm:$0xf]
        %v247 = vld [vmem:[#allocation5 + $0xc] sm:$0xf]
        %v248 = vld [vmem:[#allocation5 + $0x10] sm:$0xf]
        %v249 = vld [vmem:[#allocation5 + $0x14] sm:$0xf]
        %v250 = vld [vmem:[#allocation5 + $0x18] sm:$0xf]
        %v251 = vld [vmem:[#allocation5 + $0x1c] sm:$0xf]
        %v252 = vld [vmem:[#allocation5 + $0x20] sm:$0xf]
        %v253 = vld [vmem:[#allocation5 + $0x24] sm:$0xf]
        %v254 = vld [vmem:[#allocation5 + $0x28] sm:$0xf]
        %v255 = vld [vmem:[#allocation5 + $0x2c] sm:$0xf]
        %v256 = vld [vmem:[#allocation5 + $0x30] sm:$0xf]
        %v257 = vld [vmem:[#allocation5 + $0x34] sm:$0xf]
        %v258 = vld [vmem:[#allocation5 + $0x38] sm:$0xf]
        %v259 = vld [vmem:[#allocation5 + $0x3c] sm:$0xf]
        %v260 = vld [vmem:[#allocation7] sm:$0xff]
        %v277 = vunpack.c.l.b16 %v244
        %v278 = vunpack.c.l.b16 %v245
        %v279 = vunpack.c.l.b16 %v246
        %v280 = vunpack.c.l.b16 %v247
        %v281 = vunpack.c.l.b16 %v248
        %v282 = vunpack.c.l.b16 %v249
        %v283 = vunpack.c.l.b16 %v250
        %v284 = vunpack.c.l.b16 %v251
        %v285 = vunpack.c.l.b16 %v252
        %v286 = vunpack.c.l.b16 %v253
        %v287 = vunpack.c.l.b16 %v254
        %v288 = vunpack.c.l.b16 %v255
        %v289 = vunpack.c.l.b16 %v256
        %v290 = vunpack.c.l.b16 %v257
        %v291 = vunpack.c.l.b16 %v258
        %v292 = vunpack.c.l.b16 %v259
        %v293 = vpack.c.b16 %v278, %v277
        %v294 = vpack.c.b16 %v280, %v279
        %v295 = vpack.c.b16 %v282, %v281
        %v296 = vpack.c.b16 %v284, %v283
        %v297 = vpack.c.b16 %v286, %v285
        %v298 = vpack.c.b16 %v288, %v287
        %v299 = vpack.c.b16 %v290, %v289
        %v300 = vpack.c.b16 %v292, %v291
        %309 = vmatpush.bf16.msra.mxu0 %v300
        %310 = vmatpush.bf16.msra.mxu0 %v299
        %311 = vmatpush.bf16.msra.mxu0 %v298
        %312 = vmatpush.bf16.msra.mxu0 %v297
        %313 = vmatpush.bf16.msra.mxu0 %v296
        %314 = vmatpush.bf16.msra.mxu0 %v295
        %315 = vmatpush.bf16.msra.mxu0 %v294
        %316 = vmatpush.bf16.msra.mxu0 %v293
        %317 = vmatmul.bf16.gmra.mxu0 %v243
        %v318 = vpop.f32.mrf.mxu0
        %v319 = vadd.f32 %v260, %v318
        %v320 = vpop.f32.mrf.mxu0
        %321 = vdwg.mxu0
        %322 = vst [vmem:[%s242] sm:$0xff] %v319
        %s323 = sand.u32 %s118, 1
        %s324 = scalar_lea.sflag [#allocation4], %s323
        %s325 = sand.u32 %s118, 1
        %s326 = smul.addr %s325, 8
        %s327 = scalar_lea.vmem [#allocation8], %s326
        // Predicated region
        $region45: #{tpu_custom_call.1} parent=31 // pred_check
          %p328 = pneg %p128
        $region46: #{tpu_custom_call.1} parent=31 // pred_check_branch
          %330 = sbr.rel (%p328) target = $region48
        $region47: #{tpu_custom_call.1} parent=31 // pred_region
          %332 = vsyncadd %s324, 0
          %s333 = sadd.s32 %s26, %s25
          %s334 = smul.addr %s333, 8
          %s335 = scalar_lea.hbm %s3, %s334
          %s337 = sshll.u32 %s327, 4
          %s338 = int_to_ptr.vmem [resolvable:$true] %s337
          %s339 = sshll.u32 %s335, 4
          %s340 = int_to_ptr.hbm [resolvable:$true] %s339
          %342 = dma.vmem_to_hbm [thread:$0]  %s338, 128, %s340, %s324
        $region48: #{tpu_custom_call.1} parent=31 // pred_fallthru
          _
      $region32: #{tpu_custom_call.1} parent=5 // pred_fallthru
        _
      %p343 = scmp.le.s32.totalorder 2, %s16
      // Predicated region
      $region49: #{tpu_custom_call.1} parent=5 // pred_check
        %p344 = pneg %p343
      $region50: #{tpu_custom_call.1} parent=5 // pred_check_branch
        %346 = sbr.rel (%p344) target = $region52
      $region51: #{tpu_custom_call.1} parent=5 // pred_region
        %s347 = ssub.s32 %s16, 2
        // Predicated region
        $region53: #{tpu_custom_call.1} parent=51 // pred_check
          %p348 = pneg %p134
        $region54: #{tpu_custom_call.1} parent=51 // pred_check_branch
          %350 = sbr.rel (%p348) target = $region56
        $region55: #{tpu_custom_call.1} parent=51 // pred_region
          %s351 = sand.u32 %s119, 1
          %s352 = scalar_lea.sflag [#allocation4], %s351
          %s353 = sand.u32 %s119, 1
          %s354 = smul.addr %s353, 8
          %s355 = scalar_lea.vmem [#allocation8], %s354
          %357 = dma.done %s352, 128
        $region56: #{tpu_custom_call.1} parent=51 // pred_fallthru
          _
      $region52: #{tpu_custom_call.1} parent=5 // pred_fallthru
        _
    $region6: #{tpu_custom_call.1} parent=1 // loop_footer
      %s20 = sadd.s32 1, %s16
    $region7: #{tpu_custom_call.1} parent=1 // loop_footer_branch
      %15 = sbr.rel target = $region3
    $region8: #{tpu_custom_call.1} parent=1 // loop_exit
      _
    %358 = vsyncpa [#allocation3], 1
    %s359 = scalar_lea.sflag [#allocation3], 1
    %360 = vsyncpa %s359, 1
    %361 = vsyncpa [#allocation6], 1
    %362 = vsyncpa [#allocation4], 1
    %s363 = scalar_lea.sflag [#allocation4], 1
    %364 = vsyncpa %s363, 1

</llo_original>
